<compile_context>
chip_gen: v6e
topology: v6e:2x2x1
jax: 0.10.0
libtpu: 0.0.40
codegen_flags: <defaults>
</compile_context>

<pallas_src>
import functools

import jax
import jax.numpy as jnp
from jax.experimental import pallas as pl
from jax.experimental.pallas import tpu as pltpu


def _round_up(a: int, b: int) -> int:
    return ((a + b - 1) // b) * b


def _voting_kernel(x_ref, pool_ref, o_ref, *, inv_v: float, precision):
    # x_ref: (TN, LB), pool_ref: (LB, TC) block-diagonal 0/1, o_ref: (TN, TC)
    acc = jnp.dot(
        x_ref[...],
        pool_ref[...],
        preferred_element_type=jnp.float32,
        precision=precision,
    )
    o_ref[...] = (acc * inv_v).astype(o_ref.dtype)


def voting_layer(x: jax.Array, voter_num: int) -> jax.Array:
    """Equivalent of VotingLayer(voter_num).forward(x) for x of shape [N, L]."""
    n, l = x.shape
    assert l % voter_num == 0, "last dim must be divisible by voter_num"
    c = l // voter_num
    dtype = x.dtype
    itemsize = jnp.dtype(dtype).itemsize
    sublane = {4: 8, 2: 16, 1: 32}.get(itemsize, 8)

    # --- class tiling: exploit the block-diagonal structure of the pool ------
    # When C is a multiple of 128 and larger than one lane-width, tile classes
    # so the resident pool block and the MXU FLOPs stay O(TC) instead of O(C).
    if c > 128 and c % 128 == 0:
        tc = 128
    else:
        tc = c
    grid_c = c // tc
    lb = tc * voter_num  # x / pool block width along the L axis

    # Padded tile dims used for all VMEM accounting (lane -> 128, sublane mult).
    lb_pad = _round_up(lb, 128)
    cb_pad = _round_up(tc, 128)

    # --- generation-aware VMEM budget ----------------------------------------
    try:
        phys_vmem = int(pltpu.get_tpu_info().vmem_capacity_bytes)
    except Exception:
        phys_vmem = 64 * 1024 * 1024  # conservative minimum across generations
    budget = max(min(phys_vmem // 4, 32 * 1024 * 1024), 8 * 1024 * 1024)

    # Pool block is revisited with a constant block index; account for it
    # conservatively as double-buffered.
    pool_bytes = 2 * _round_up(lb, sublane) * cb_pad * itemsize
    internal = 1 * 1024 * 1024  # compiler internal scratch headroom
    per_row = 2 * (lb_pad + cb_pad) * itemsize  # double-buffered input + output

    avail = max(budget - pool_bytes - internal, per_row * sublane)
    tn_vmem = avail // per_row
    # Size TN against a ~4 MiB per-step DMA target (not a fixed row cap).
    tn_target = max((4 * 1024 * 1024) // (lb_pad * itemsize), sublane)
    tn = max(sublane, min(tn_vmem, tn_target))
    tn = (tn // sublane) * sublane

    if tn >= n:
        if n > sublane:
            # Guarantee >=2 row blocks so both TensorCores get work (v7x megacore).
            tn = _round_up(pl.cdiv(n, 2), sublane)
        else:
            tn = n  # single full-extent block (always a legal block shape)
    grid_n = pl.cdiv(n, tn)
    grid = (grid_n, grid_c)

    # Explicit scoped-VMEM limit from the padded-shape footprint.
    tn_pad = _round_up(min(tn, n), sublane)
    footprint = 2 * tn_pad * (lb_pad + cb_pad) * itemsize + pool_bytes + internal
    vmem_limit = int(
        min(max(footprint + 2 * 1024 * 1024, 32 * 1024 * 1024), phys_vmem)
    )

    # Block-diagonal selection matrix (exact 0/1 values in any dtype); the 1/V
    # scale is applied once inside the kernel on the small f32 accumulator.
    pool = (jnp.arange(l)[:, None] // voter_num == jnp.arange(c)[None, :]).astype(dtype)

    # Exact f32 accumulation on the MXU for f32 logits (avoid bf16 truncation).
    precision = jax.lax.Precision.HIGHEST if dtype == jnp.float32 else None
    kernel = functools.partial(
        _voting_kernel, inv_v=1.0 / voter_num, precision=precision
    )

    cost = pl.CostEstimate(
        flops=2 * n * l * tc,
        transcendentals=0,
        bytes_accessed=(n * l + n * c + grid_n * l * tc) * itemsize,
    )

    return pl.pallas_call(
        kernel,
        out_shape=jax.ShapeDtypeStruct((n, c), dtype),
        grid=grid,
        in_specs=[
            # row-tile x class-block tile of the logits
            pl.BlockSpec((tn, lb), lambda i, j: (i, j)),
            # diagonal slab of the block-diagonal pooling matrix
            pl.BlockSpec((lb, tc), lambda i, j: (j, j)),
        ],
        out_specs=pl.BlockSpec((tn, tc), lambda i, j: (i, j)),
        compiler_params=pltpu.CompilerParams(
            dimension_semantics=("parallel", "parallel"),
            vmem_limit_bytes=vmem_limit,
        ),
        cost_estimate=cost,
    )(x, pool)


def _reference(x: jax.Array, voter_num: int) -> jax.Array:
    n, l = x.shape
    c = l // voter_num
    return x.reshape(n, c, voter_num).mean(axis=-1)


if __name__ == "__main__":
    key = jax.random.PRNGKey(0)
    k1, k2, k3 = jax.random.split(key, 3)

    # 1) Small shapes consistent with the module: batch=2, num_classes=4, voter_num=8.
    batch, num_classes, voter_num = 2, 4, 8
    x = jax.random.normal(k1, (batch, num_classes * voter_num), dtype=jnp.float32)
    y = jax.block_until_ready(voting_layer(x, voter_num))
    assert y.shape == (batch, num_classes)
    assert jnp.allclose(y, _reference(x, voter_num), atol=1e-5, rtol=1e-5)

    # 2) DVS-Gesture-like sizes (11 classes, 10 voters), batch not a multiple of 8
    #    (exercises the >=2-row-block split and partial boundary blocks).
    b2, c2, v2 = 10, 11, 10
    x2 = jax.random.normal(k2, (b2, c2 * v2), dtype=jnp.float32)
    y2 = jax.block_until_ready(voting_layer(x2, v2))
    assert jnp.allclose(y2, _reference(x2, v2), atol=1e-5, rtol=1e-5)

    # 3) Larger class count (C multiple of 128) exercising the block-diagonal
    #    class-tiled path (grid over both row and class blocks).
    b3, c3, v3 = 64, 256, 4
    x3 = jax.random.normal(k3, (b3, c3 * v3), dtype=jnp.float32)
    y3 = jax.block_until_ready(voting_layer(x3, v3))
    assert jnp.allclose(y3, _reference(x3, v3), atol=1e-5, rtol=1e-5)

    print("KERNEL_OK")
</pallas_src>

<mosaic_0001>
module attributes {stable_mosaic.version = 11 : i64} {
  func.func @_voting_kernel(%arg0: i32, %arg1: i32, %arg2: memref<2x32xf32, #tpu.memory_space<vmem>>, %arg3: memref<32x4xf32, #tpu.memory_space<vmem>>, %arg4: memref<2x4xf32, #tpu.memory_space<vmem>>) attributes {dimension_semantics = [#tpu.dimension_semantics<parallel>, #tpu.dimension_semantics<parallel>], iteration_bounds = array<i64: 1, 1>, scalar_prefetch = 0 : i64, scratch_operands = 0 : i64, tpu.core_type = #tpu.core_type<tc>, window_params = [{transform_indices = @transform_0, window_bounds = array<i64: 2, 32>}, {transform_indices = @transform_1, window_bounds = array<i64: 32, 4>}, {transform_indices = @transform_2, window_bounds = array<i64: 2, 4>}]} {
    %c0 = arith.constant 0 : index
    %c0_0 = arith.constant 0 : index
    %0 = vector.load %arg2[%c0, %c0_0] : memref<2x32xf32, #tpu.memory_space<vmem>>, vector<2x32xf32>
    %c0_1 = arith.constant 0 : index
    %c0_2 = arith.constant 0 : index
    %1 = vector.load %arg3[%c0_1, %c0_2] : memref<32x4xf32, #tpu.memory_space<vmem>>, vector<32x4xf32>
    %cst = arith.constant dense<0.000000e+00> : vector<2x4xf32>
    %2 = tpu.matmul %0, %1, %cst {dimension_numbers = #tpu.dot_dimension_numbers<[1], [0], [0], [1], [0, 0, 1, 1], [], []>, precision = #tpu.contract_precision<fp32>} : vector<2x32xf32>, vector<32x4xf32>, vector<2x4xf32> -> vector<2x4xf32>
    %cst_3 = arith.constant 1.250000e-01 : f32
    %3 = vector.broadcast %cst_3 : f32 to vector<2x4xf32>
    %4 = arith.mulf %2, %3 : vector<2x4xf32>
    %c0_4 = arith.constant 0 : index
    %c0_5 = arith.constant 0 : index
    %5 = vector.load %arg4[%c0_4, %c0_5] : memref<2x4xf32, #tpu.memory_space<vmem>>, vector<2x4xf32>
    tpu.vector_store %arg4[%c0_4, %c0_5], %4 {strides = array<i32>} : memref<2x4xf32, #tpu.memory_space<vmem>>, vector<2x4xf32>,
    return
  }
  func.func @transform_0(%arg0: i32, %arg1: i32) -> (i32, i32) {
    %c0_i32 = arith.constant 0 : i32
    return %arg0, %arg1 : i32, i32
  }
  func.func @transform_1(%arg0: i32, %arg1: i32) -> (i32, i32) {
    %c0_i32 = arith.constant 0 : i32
    return %arg1, %arg1 : i32, i32
  }
  func.func @transform_2(%arg0: i32, %arg1: i32) -> (i32, i32) {
    %c0_i32 = arith.constant 0 : i32
    return %arg0, %arg1 : i32, i32
  }
}

</mosaic_0001>

<llo_original>
// kernel: tpu_custom_call.1
$region0: #{tpu_custom_call.1}
  #allocation0 [shape = 'u32[]', space=smem, size = 0x4, offset = 0x4, fixed_abs, tag = 'smem constant byte address 0x4 - core index']
  #allocation1 [shape = 'u32[144,128]{1,0:T(1,128)}', space=vmem, size = 0x12000, scoped, tag = 'internal scratch']
  %s0 = inlined_call_operand.vmem [shape: f32[2,32], index: 0, kind: input, shape index: {}]
  %s1 = inlined_call_operand.vmem [shape: f32[32,4], index: 1, kind: input, shape index: {}]
  %s2 = inlined_call_operand.hbm [shape: f32[2,4], index: 2, kind: output, shape index: {}]
  %s3 = sld [smem:[#allocation0]]
  $region18: #{tpu_custom_call.1} parent=0
    _
  %s5 = ssub.s32 1, %s3
  %s6 = scalar_select 0, %s5, %s3
  $region1: #{tpu_custom_call.1} parent=0
    #allocation2 [shape = 'u8[1024]{0}', space=vmem, size = 0x400, scoped, tag = 'output window, operand 0, single buffered']
    #allocation3 [shape = 's32[1]{0}', space=sflag, size = 0x4, scoped, tag = 'scoped memory for tpu_custom_call.1']
    %7 = vsyncpa [#allocation3], 0
    // Predicated region
    $region2: #{tpu_custom_call.1} parent=1 // pred_check
      _
    $region3: #{tpu_custom_call.1} parent=1 // pred_check_branch
      %9 = sbr.rel (0) target = $region5
    $region4: #{tpu_custom_call.1} parent=1 // pred_region
      _
    $region5: #{tpu_custom_call.1} parent=1 // pred_fallthru
      _
    // Predicated region
    $region6: #{tpu_custom_call.1} parent=1 // pred_check
      _
    $region7: #{tpu_custom_call.1} parent=1 // pred_check_branch
      %11 = sbr.rel (0) target = $region9
    $region8: #{tpu_custom_call.1} parent=1 // pred_region
      _
    $region9: #{tpu_custom_call.1} parent=1 // pred_fallthru
      _
    %v12 = vld [vmem:[%s0] sm:$0x3]
    %v13 = vld [vmem:[%s1] sm:$0xff]
    %v14 = vld [vmem:[%s1 + $0x8] sm:$0xff]
    %v15 = vld [vmem:[%s1 + $0x10] sm:$0xff]
    %v16 = vld [vmem:[%s1 + $0x18] sm:$0xff]
    %vm17 = vcmask 261120
    %v19 = vsel %vm17, %v12, 0
    %21 = vmatprep.subr.mxu0 0.0
    %22 = vmatpush1.msra.mxu0 0.0
    %23 = vmatprep.subr.mxu0 0.0
    %24 = vmatpush1.msra.mxu0 0.0
    %25 = vmatprep.subr.mxu0 0.0
    %26 = vmatpush1.msra.mxu0 0.0
    %27 = vmatprep.subr.mxu0 0.0
    %28 = vmatpush1.msra.mxu0 0.0
    %29 = vmatprep.subr.mxu0 0.0
    %30 = vmatpush1.msra.mxu0 0.0
    %31 = vmatprep.subr.mxu0 0.0
    %32 = vmatpush1.msra.mxu0 0.0
    %33 = vmatprep.subr.mxu0 0.0
    %34 = vmatpush1.msra.mxu0 0.0
    %35 = vmatprep.subr.mxu0 0.0
    %36 = vmatpush1.msra.mxu0 0.0
    %37 = vmatprep.subr.mxu0 0.0
    %38 = vmatpush1.msra.mxu0 0.0
    %39 = vmatprep.subr.mxu0 0.0
    %40 = vmatpush1.msra.mxu0 0.0
    %41 = vmatprep.subr.mxu0 0.0
    %42 = vmatpush1.msra.mxu0 0.0
    %43 = vmatprep.subr.mxu0 0.0
    %44 = vmatpush1.msra.mxu0 0.0
    %45 = vmatprep.subr.mxu0 0.0
    %v46 = vand.u32 %v16, 4294901760
    %47 = vmatpush1.msra.mxu0 %v46
    %48 = vmatprep.subr.mxu0 0.0
    %v49 = vand.u32 %v15, 4294901760
    %50 = vmatpush1.msra.mxu0 %v49
    %51 = vmatprep.subr.mxu0 0.0
    %v52 = vand.u32 %v14, 4294901760
    %53 = vmatpush1.msra.mxu0 %v52
    %54 = vmatprep.subr.mxu0 0.0
    %v55 = vand.u32 %v13, 4294901760
    %56 = vmatpush1.msra.mxu0 %v55
    %57 = vmatprep.subr.mxu0 0.0
    %58 = vmatpush2.msra.mxu0 0.0
    %59 = vmatprep.subr.mxu0 0.0
    %60 = vmatpush2.msra.mxu0 0.0
    %61 = vmatprep.subr.mxu0 0.0
    %62 = vmatpush2.msra.mxu0 0.0
    %63 = vmatprep.subr.mxu0 0.0
    %64 = vmatpush2.msra.mxu0 0.0
    %65 = vmatprep.subr.mxu0 0.0
    %66 = vmatpush2.msra.mxu0 0.0
    %67 = vmatprep.subr.mxu0 0.0
    %68 = vmatpush2.msra.mxu0 0.0
    %69 = vmatprep.subr.mxu0 0.0
    %70 = vmatpush2.msra.mxu0 0.0
    %71 = vmatprep.subr.mxu0 0.0
    %72 = vmatpush2.msra.mxu0 0.0
    %73 = vmatprep.subr.mxu0 0.0
    %74 = vmatpush2.msra.mxu0 0.0
    %75 = vmatprep.subr.mxu0 0.0
    %76 = vmatpush2.msra.mxu0 0.0
    %77 = vmatprep.subr.mxu0 0.0
    %78 = vmatpush2.msra.mxu0 0.0
    %79 = vmatprep.subr.mxu0 0.0
    %80 = vmatpush2.msra.mxu0 0.0
    %81 = vmatprep.subr.mxu0 0.0
    %82 = vmatpush2.msra.mxu0 0.0
    %83 = vmatprep.subr.mxu0 0.0
    %84 = vmatpush2.msra.mxu0 0.0
    %85 = vmatprep.subr.mxu0 0.0
    %86 = vmatpush2.msra.mxu0 0.0
    %87 = vmatprep.subr.mxu0 0.0
    %88 = vmatpush2.msra.mxu0 0.0
    %89 = vmatprep.mubr.f32.mxu0 0.0
    %v90 = vand.u32 %v19, 4294901760
    %v91 = vsub.f32 %v19, %v90
    %v92 = vand.u32 %v91, 4294901760
    %v93 = vsub.f32 %v91, %v92
    %v94 = vand.u32 %v93, 4294901760
    %95 = vmatmul.mubr.f32.gmra.mxu0 %v94
    %v96 = vpop.f32.mrf.mxu0
    %v97 = vadd.f32 0.0, %v96
    %v98 = vpop.f32.mrf.mxu0
    %99 = vdwg.mxu0
    %100 = vmatprep.subr.mxu0 0.0
    %101 = vmatpush1.msra.mxu0 0.0
    %102 = vmatprep.subr.mxu0 0.0
    %103 = vmatpush1.msra.mxu0 0.0
    %104 = vmatprep.subr.mxu0 0.0
    %105 = vmatpush1.msra.mxu0 0.0
    %106 = vmatprep.subr.mxu0 0.0
    %107 = vmatpush1.msra.mxu0 0.0
    %108 = vmatprep.subr.mxu0 0.0
    %109 = vmatpush1.msra.mxu0 0.0
    %110 = vmatprep.subr.mxu0 0.0
    %111 = vmatpush1.msra.mxu0 0.0
    %112 = vmatprep.subr.mxu0 0.0
    %113 = vmatpush1.msra.mxu0 0.0
    %114 = vmatprep.subr.mxu0 0.0
    %115 = vmatpush1.msra.mxu0 0.0
    %116 = vmatprep.subr.mxu0 0.0
    %117 = vmatpush1.msra.mxu0 0.0
    %118 = vmatprep.subr.mxu0 0.0
    %119 = vmatpush1.msra.mxu0 0.0
    %120 = vmatprep.subr.mxu0 0.0
    %121 = vmatpush1.msra.mxu0 0.0
    %122 = vmatprep.subr.mxu0 0.0
    %123 = vmatpush1.msra.mxu0 0.0
    %124 = vmatprep.subr.mxu0 0.0
    %v125 = vand.u32 %v16, 4294901760
    %v126 = vsub.f32 %v16, %v125
    %v127 = vand.u32 %v126, 4294901760
    %v128 = vsub.f32 %v126, %v127
    %v129 = vand.u32 %v128, 4294901760
    %130 = vmatpush1.msra.mxu0 %v129
    %131 = vmatprep.subr.mxu0 0.0
    %v132 = vand.u32 %v15, 4294901760
    %v133 = vsub.f32 %v15, %v132
    %v134 = vand.u32 %v133, 4294901760
    %v135 = vsub.f32 %v133, %v134
    %v136 = vand.u32 %v135, 4294901760
    %137 = vmatpush1.msra.mxu0 %v136
    %138 = vmatprep.subr.mxu0 0.0
    %v139 = vand.u32 %v14, 4294901760
    %v140 = vsub.f32 %v14, %v139
    %v141 = vand.u32 %v140, 4294901760
    %v142 = vsub.f32 %v140, %v141
    %v143 = vand.u32 %v142, 4294901760
    %144 = vmatpush1.msra.mxu0 %v143
    %145 = vmatprep.subr.mxu0 0.0
    %v146 = vand.u32 %v13, 4294901760
    %v147 = vsub.f32 %v13, %v146
    %v148 = vand.u32 %v147, 4294901760
    %v149 = vsub.f32 %v147, %v148
    %v150 = vand.u32 %v149, 4294901760
    %151 = vmatpush1.msra.mxu0 %v150
    %152 = vmatprep.subr.mxu0 0.0
    %153 = vmatpush2.msra.mxu0 0.0
    %154 = vmatprep.subr.mxu0 0.0
    %155 = vmatpush2.msra.mxu0 0.0
    %156 = vmatprep.subr.mxu0 0.0
    %157 = vmatpush2.msra.mxu0 0.0
    %158 = vmatprep.subr.mxu0 0.0
    %159 = vmatpush2.msra.mxu0 0.0
    %160 = vmatprep.subr.mxu0 0.0
    %161 = vmatpush2.msra.mxu0 0.0
    %162 = vmatprep.subr.mxu0 0.0
    %163 = vmatpush2.msra.mxu0 0.0
    %164 = vmatprep.subr.mxu0 0.0
    %165 = vmatpush2.msra.mxu0 0.0
    %166 = vmatprep.subr.mxu0 0.0
    %167 = vmatpush2.msra.mxu0 0.0
    %168 = vmatprep.subr.mxu0 0.0
    %169 = vmatpush2.msra.mxu0 0.0
    %170 = vmatprep.subr.mxu0 0.0
    %171 = vmatpush2.msra.mxu0 0.0
    %172 = vmatprep.subr.mxu0 0.0
    %173 = vmatpush2.msra.mxu0 0.0
    %174 = vmatprep.subr.mxu0 0.0
    %175 = vmatpush2.msra.mxu0 0.0
    %176 = vmatprep.subr.mxu0 0.0
    %177 = vmatpush2.msra.mxu0 0.0
    %178 = vmatprep.subr.mxu0 0.0
    %179 = vmatpush2.msra.mxu0 0.0
    %180 = vmatprep.subr.mxu0 0.0
    %181 = vmatpush2.msra.mxu0 0.0
    %182 = vmatprep.subr.mxu0 0.0
    %183 = vmatpush2.msra.mxu0 0.0
    %184 = vmatprep.mubr.f32.mxu0 0.0
    %v185 = vand.u32 %v19, 4294901760
    %186 = vmatmul.mubr.f32.gmra.mxu0 %v185
    %v187 = vpop.f32.mrf.mxu0
    %v188 = vadd.f32 %v97, %v187
    %v189 = vpop.f32.mrf.mxu0
    %190 = vdwg.mxu0
    %191 = vmatprep.subr.mxu0 0.0
    %192 = vmatpush1.msra.mxu0 0.0
    %193 = vmatprep.subr.mxu0 0.0
    %194 = vmatpush1.msra.mxu0 0.0
    %195 = vmatprep.subr.mxu0 0.0
    %196 = vmatpush1.msra.mxu0 0.0
    %197 = vmatprep.subr.mxu0 0.0
    %198 = vmatpush1.msra.mxu0 0.0
    %199 = vmatprep.subr.mxu0 0.0
    %200 = vmatpush1.msra.mxu0 0.0
    %201 = vmatprep.subr.mxu0 0.0
    %202 = vmatpush1.msra.mxu0 0.0
    %203 = vmatprep.subr.mxu0 0.0
    %204 = vmatpush1.msra.mxu0 0.0
    %205 = vmatprep.subr.mxu0 0.0
    %206 = vmatpush1.msra.mxu0 0.0
    %207 = vmatprep.subr.mxu0 0.0
    %208 = vmatpush1.msra.mxu0 0.0
    %209 = vmatprep.subr.mxu0 0.0
    %210 = vmatpush1.msra.mxu0 0.0
    %211 = vmatprep.subr.mxu0 0.0
    %212 = vmatpush1.msra.mxu0 0.0
    %213 = vmatprep.subr.mxu0 0.0
    %214 = vmatpush1.msra.mxu0 0.0
    %215 = vmatprep.subr.mxu0 0.0
    %v216 = vand.u32 %v16, 4294901760
    %v217 = vsub.f32 %v16, %v216
    %218 = vmatpush1.msra.mxu0 %v217
    %219 = vmatprep.subr.mxu0 0.0
    %v220 = vand.u32 %v15, 4294901760
    %v221 = vsub.f32 %v15, %v220
    %222 = vmatpush1.msra.mxu0 %v221
    %223 = vmatprep.subr.mxu0 0.0
    %v224 = vand.u32 %v14, 4294901760
    %v225 = vsub.f32 %v14, %v224
    %226 = vmatpush1.msra.mxu0 %v225
    %227 = vmatprep.subr.mxu0 0.0
    %v228 = vand.u32 %v13, 4294901760
    %v229 = vsub.f32 %v13, %v228
    %230 = vmatpush1.msra.mxu0 %v229
    %231 = vmatprep.subr.mxu0 0.0
    %232 = vmatpush2.msra.mxu0 0.0
    %233 = vmatprep.subr.mxu0 0.0
    %234 = vmatpush2.msra.mxu0 0.0
    %235 = vmatprep.subr.mxu0 0.0
    %236 = vmatpush2.msra.mxu0 0.0
    %237 = vmatprep.subr.mxu0 0.0
    %238 = vmatpush2.msra.mxu0 0.0
    %239 = vmatprep.subr.mxu0 0.0
    %240 = vmatpush2.msra.mxu0 0.0
    %241 = vmatprep.subr.mxu0 0.0
    %242 = vmatpush2.msra.mxu0 0.0
    %243 = vmatprep.subr.mxu0 0.0
    %244 = vmatpush2.msra.mxu0 0.0
    %245 = vmatprep.subr.mxu0 0.0
    %246 = vmatpush2.msra.mxu0 0.0
    %247 = vmatprep.subr.mxu0 0.0
    %248 = vmatpush2.msra.mxu0 0.0
    %249 = vmatprep.subr.mxu0 0.0
    %250 = vmatpush2.msra.mxu0 0.0
    %251 = vmatprep.subr.mxu0 0.0
    %252 = vmatpush2.msra.mxu0 0.0
    %253 = vmatprep.subr.mxu0 0.0
    %254 = vmatpush2.msra.mxu0 0.0
    %255 = vmatprep.subr.mxu0 0.0
    %256 = vmatpush2.msra.mxu0 0.0
    %257 = vmatprep.subr.mxu0 0.0
    %258 = vmatpush2.msra.mxu0 0.0
    %259 = vmatprep.subr.mxu0 0.0
    %260 = vmatpush2.msra.mxu0 0.0
    %261 = vmatprep.subr.mxu0 0.0
    %262 = vmatpush2.msra.mxu0 0.0
    %263 = vmatprep.mubr.f32.mxu0 0.0
    %v264 = vand.u32 %v19, 4294901760
    %v265 = vsub.f32 %v19, %v264
    %266 = vmatmul.mubr.f32.gmra.mxu0 %v265
    %v267 = vpop.f32.mrf.mxu0
    %v268 = vadd.f32 %v188, %v267
    %v269 = vpop.f32.mrf.mxu0
    %270 = vdwg.mxu0
    %271 = vmatprep.subr.mxu0 0.0
    %272 = vmatpush1.msra.mxu0 0.0
    %273 = vmatprep.subr.mxu0 0.0
    %274 = vmatpush1.msra.mxu0 0.0
    %275 = vmatprep.subr.mxu0 0.0
    %276 = vmatpush1.msra.mxu0 0.0
    %277 = vmatprep.subr.mxu0 0.0
    %278 = vmatpush1.msra.mxu0 0.0
    %279 = vmatprep.subr.mxu0 0.0
    %280 = vmatpush1.msra.mxu0 0.0
    %281 = vmatprep.subr.mxu0 0.0
    %282 = vmatpush1.msra.mxu0 0.0
    %283 = vmatprep.subr.mxu0 0.0
    %284 = vmatpush1.msra.mxu0 0.0
    %285 = vmatprep.subr.mxu0 0.0
    %286 = vmatpush1.msra.mxu0 0.0
    %287 = vmatprep.subr.mxu0 0.0
    %288 = vmatpush1.msra.mxu0 0.0
    %289 = vmatprep.subr.mxu0 0.0
    %290 = vmatpush1.msra.mxu0 0.0
    %291 = vmatprep.subr.mxu0 0.0
    %292 = vmatpush1.msra.mxu0 0.0
    %293 = vmatprep.subr.mxu0 0.0
    %294 = vmatpush1.msra.mxu0 0.0
    %295 = vmatprep.subr.mxu0 0.0
    %v296 = vand.u32 %v16, 4294901760
    %297 = vmatpush1.msra.mxu0 %v296
    %298 = vmatprep.subr.mxu0 0.0
    %v299 = vand.u32 %v15, 4294901760
    %300 = vmatpush1.msra.mxu0 %v299
    %301 = vmatprep.subr.mxu0 0.0
    %v302 = vand.u32 %v14, 4294901760
    %303 = vmatpush1.msra.mxu0 %v302
    %304 = vmatprep.subr.mxu0 0.0
    %v305 = vand.u32 %v13, 4294901760
    %306 = vmatpush1.msra.mxu0 %v305
    %307 = vmatprep.subr.mxu0 0.0
    %308 = vmatpush2.msra.mxu0 0.0
    %309 = vmatprep.subr.mxu0 0.0
    %310 = vmatpush2.msra.mxu0 0.0
    %311 = vmatprep.subr.mxu0 0.0
    %312 = vmatpush2.msra.mxu0 0.0
    %313 = vmatprep.subr.mxu0 0.0
    %314 = vmatpush2.msra.mxu0 0.0
    %315 = vmatprep.subr.mxu0 0.0
    %316 = vmatpush2.msra.mxu0 0.0
    %317 = vmatprep.subr.mxu0 0.0
    %318 = vmatpush2.msra.mxu0 0.0
    %319 = vmatprep.subr.mxu0 0.0
    %320 = vmatpush2.msra.mxu0 0.0
    %321 = vmatprep.subr.mxu0 0.0
    %322 = vmatpush2.msra.mxu0 0.0
    %323 = vmatprep.subr.mxu0 0.0
    %324 = vmatpush2.msra.mxu0 0.0
    %325 = vmatprep.subr.mxu0 0.0
    %326 = vmatpush2.msra.mxu0 0.0
    %327 = vmatprep.subr.mxu0 0.0
    %328 = vmatpush2.msra.mxu0 0.0
    %329 = vmatprep.subr.mxu0 0.0
    %330 = vmatpush2.msra.mxu0 0.0
    %331 = vmatprep.subr.mxu0 0.0
    %332 = vmatpush2.msra.mxu0 0.0
    %333 = vmatprep.subr.mxu0 0.0
    %334 = vmatpush2.msra.mxu0 0.0
    %335 = vmatprep.subr.mxu0 0.0
    %336 = vmatpush2.msra.mxu0 0.0
    %337 = vmatprep.subr.mxu0 0.0
    %338 = vmatpush2.msra.mxu0 0.0
    %339 = vmatprep.mubr.f32.mxu0 0.0
    %v340 = vand.u32 %v19, 4294901760
    %v341 = vsub.f32 %v19, %v340
    %v342 = vand.u32 %v341, 4294901760
    %343 = vmatmul.mubr.f32.gmra.mxu0 %v342
    %v344 = vpop.f32.mrf.mxu0
    %v345 = vadd.f32 %v268, %v344
    %v346 = vpop.f32.mrf.mxu0
    %347 = vdwg.mxu0
    %348 = vmatprep.subr.mxu0 0.0
    %349 = vmatpush1.msra.mxu0 0.0
    %350 = vmatprep.subr.mxu0 0.0
    %351 = vmatpush1.msra.mxu0 0.0
    %352 = vmatprep.subr.mxu0 0.0
    %353 = vmatpush1.msra.mxu0 0.0
    %354 = vmatprep.subr.mxu0 0.0
    %355 = vmatpush1.msra.mxu0 0.0
    %356 = vmatprep.subr.mxu0 0.0
    %357 = vmatpush1.msra.mxu0 0.0
    %358 = vmatprep.subr.mxu0 0.0
    %359 = vmatpush1.msra.mxu0 0.0
    %360 = vmatprep.subr.mxu0 0.0
    %361 = vmatpush1.msra.mxu0 0.0
    %362 = vmatprep.subr.mxu0 0.0
    %363 = vmatpush1.msra.mxu0 0.0
    %364 = vmatprep.subr.mxu0 0.0
    %365 = vmatpush1.msra.mxu0 0.0
    %366 = vmatprep.subr.mxu0 0.0
    %367 = vmatpush1.msra.mxu0 0.0
    %368 = vmatprep.subr.mxu0 0.0
    %369 = vmatpush1.msra.mxu0 0.0
    %370 = vmatprep.subr.mxu0 0.0
    %371 = vmatpush1.msra.mxu0 0.0
    %372 = vmatprep.subr.mxu0 0.0
    %v373 = vand.u32 %v16, 4294901760
    %v374 = vsub.f32 %v16, %v373
    %v375 = vand.u32 %v374, 4294901760
    %376 = vmatpush1.msra.mxu0 %v375
    %377 = vmatprep.subr.mxu0 0.0
    %v378 = vand.u32 %v15, 4294901760
    %v379 = vsub.f32 %v15, %v378
    %v380 = vand.u32 %v379, 4294901760
    %381 = vmatpush1.msra.mxu0 %v380
    %382 = vmatprep.subr.mxu0 0.0
    %v383 = vand.u32 %v14, 4294901760
    %v384 = vsub.f32 %v14, %v383
    %v385 = vand.u32 %v384, 4294901760
    %386 = vmatpush1.msra.mxu0 %v385
    %387 = vmatprep.subr.mxu0 0.0
    %v388 = vand.u32 %v13, 4294901760
    %v389 = vsub.f32 %v13, %v388
    %v390 = vand.u32 %v389, 4294901760
    %391 = vmatpush1.msra.mxu0 %v390
    %392 = vmatprep.subr.mxu0 0.0
    %393 = vmatpush2.msra.mxu0 0.0
    %394 = vmatprep.subr.mxu0 0.0
    %395 = vmatpush2.msra.mxu0 0.0
    %396 = vmatprep.subr.mxu0 0.0
    %397 = vmatpush2.msra.mxu0 0.0
    %398 = vmatprep.subr.mxu0 0.0
    %399 = vmatpush2.msra.mxu0 0.0
    %400 = vmatprep.subr.mxu0 0.0
    %401 = vmatpush2.msra.mxu0 0.0
    %402 = vmatprep.subr.mxu0 0.0
    %403 = vmatpush2.msra.mxu0 0.0
    %404 = vmatprep.subr.mxu0 0.0
    %405 = vmatpush2.msra.mxu0 0.0
    %406 = vmatprep.subr.mxu0 0.0
    %407 = vmatpush2.msra.mxu0 0.0
    %408 = vmatprep.subr.mxu0 0.0
    %409 = vmatpush2.msra.mxu0 0.0
    %410 = vmatprep.subr.mxu0 0.0
    %411 = vmatpush2.msra.mxu0 0.0
    %412 = vmatprep.subr.mxu0 0.0
    %413 = vmatpush2.msra.mxu0 0.0
    %414 = vmatprep.subr.mxu0 0.0
    %415 = vmatpush2.msra.mxu0 0.0
    %416 = vmatprep.subr.mxu0 0.0
    %417 = vmatpush2.msra.mxu0 0.0
    %418 = vmatprep.subr.mxu0 0.0
    %419 = vmatpush2.msra.mxu0 0.0
    %420 = vmatprep.subr.mxu0 0.0
    %421 = vmatpush2.msra.mxu0 0.0
    %422 = vmatprep.subr.mxu0 0.0
    %423 = vmatpush2.msra.mxu0 0.0
    %424 = vmatprep.mubr.f32.mxu0 0.0
    %v425 = vand.u32 %v19, 4294901760
    %426 = vmatmul.mubr.f32.gmra.mxu0 %v425
    %v427 = vpop.f32.mrf.mxu0
    %v428 = vadd.f32 %v345, %v427
    %v429 = vpop.f32.mrf.mxu0
    %430 = vdwg.mxu0
    %431 = vmatprep.subr.mxu0 0.0
    %432 = vmatpush1.msra.mxu0 0.0
    %433 = vmatprep.subr.mxu0 0.0
    %434 = vmatpush1.msra.mxu0 0.0
    %435 = vmatprep.subr.mxu0 0.0
    %436 = vmatpush1.msra.mxu0 0.0
    %437 = vmatprep.subr.mxu0 0.0
    %438 = vmatpush1.msra.mxu0 0.0
    %439 = vmatprep.subr.mxu0 0.0
    %440 = vmatpush1.msra.mxu0 0.0
    %441 = vmatprep.subr.mxu0 0.0
    %442 = vmatpush1.msra.mxu0 0.0
    %443 = vmatprep.subr.mxu0 0.0
    %444 = vmatpush1.msra.mxu0 0.0
    %445 = vmatprep.subr.mxu0 0.0
    %446 = vmatpush1.msra.mxu0 0.0
    %447 = vmatprep.subr.mxu0 0.0
    %448 = vmatpush1.msra.mxu0 0.0
    %449 = vmatprep.subr.mxu0 0.0
    %450 = vmatpush1.msra.mxu0 0.0
    %451 = vmatprep.subr.mxu0 0.0
    %452 = vmatpush1.msra.mxu0 0.0
    %453 = vmatprep.subr.mxu0 0.0
    %454 = vmatpush1.msra.mxu0 0.0
    %455 = vmatprep.subr.mxu0 0.0
    %v456 = vand.u32 %v16, 4294901760
    %457 = vmatpush1.msra.mxu0 %v456
    %458 = vmatprep.subr.mxu0 0.0
    %v459 = vand.u32 %v15, 4294901760
    %460 = vmatpush1.msra.mxu0 %v459
    %461 = vmatprep.subr.mxu0 0.0
    %v462 = vand.u32 %v14, 4294901760
    %463 = vmatpush1.msra.mxu0 %v462
    %464 = vmatprep.subr.mxu0 0.0
    %v465 = vand.u32 %v13, 4294901760
    %466 = vmatpush1.msra.mxu0 %v465
    %467 = vmatprep.subr.mxu0 0.0
    %468 = vmatpush2.msra.mxu0 0.0
    %469 = vmatprep.subr.mxu0 0.0
    %470 = vmatpush2.msra.mxu0 0.0
    %471 = vmatprep.subr.mxu0 0.0
    %472 = vmatpush2.msra.mxu0 0.0
    %473 = vmatprep.subr.mxu0 0.0
    %474 = vmatpush2.msra.mxu0 0.0
    %475 = vmatprep.subr.mxu0 0.0
    %476 = vmatpush2.msra.mxu0 0.0
    %477 = vmatprep.subr.mxu0 0.0
    %478 = vmatpush2.msra.mxu0 0.0
    %479 = vmatprep.subr.mxu0 0.0
    %480 = vmatpush2.msra.mxu0 0.0
    %481 = vmatprep.subr.mxu0 0.0
    %482 = vmatpush2.msra.mxu0 0.0
    %483 = vmatprep.subr.mxu0 0.0
    %484 = vmatpush2.msra.mxu0 0.0
    %485 = vmatprep.subr.mxu0 0.0
    %486 = vmatpush2.msra.mxu0 0.0
    %487 = vmatprep.subr.mxu0 0.0
    %488 = vmatpush2.msra.mxu0 0.0
    %489 = vmatprep.subr.mxu0 0.0
    %490 = vmatpush2.msra.mxu0 0.0
    %491 = vmatprep.subr.mxu0 0.0
    %492 = vmatpush2.msra.mxu0 0.0
    %493 = vmatprep.subr.mxu0 0.0
    %494 = vmatpush2.msra.mxu0 0.0
    %495 = vmatprep.subr.mxu0 0.0
    %496 = vmatpush2.msra.mxu0 0.0
    %497 = vmatprep.subr.mxu0 0.0
    %498 = vmatpush2.msra.mxu0 0.0
    %499 = vmatprep.mubr.f32.mxu0 0.0
    %v500 = vand.u32 %v19, 4294901760
    %501 = vmatmul.mubr.f32.gmra.mxu0 %v500
    %v502 = vpop.f32.mrf.mxu0
    %v503 = vadd.f32 %v428, %v502
    %v504 = vpop.f32.mrf.mxu0
    %505 = vdwg.mxu0
    %v506 = vmul.f32 %v503, 0.125
    %vm507 = vcmask 25600
    %508 = vst.msk [vmem:[#allocation2] sm:$0x3] %vm507, %v506
    // Predicated region
    $region10: #{tpu_custom_call.1} parent=1 // pred_check
      _
    $region11: #{tpu_custom_call.1} parent=1 // pred_check_branch
      %510 = sbr.rel (0) target = $region13
    $region12: #{tpu_custom_call.1} parent=1 // pred_region
      %s512 = ssub.s32 32, 32
      %513 = vsyncadd [#allocation3], %s512
      %s515 = sshll.u32 [#allocation2], 4
      %s516 = int_to_ptr.vmem [resolvable:$true] %s515
      %518 = dma.vmem_to_hbm [thread:$0]  %s516, 32, %s2, [#allocation3]
    $region13: #{tpu_custom_call.1} parent=1 // pred_fallthru
      _
    // Predicated region
    $region14: #{tpu_custom_call.1} parent=1 // pred_check
      _
    $region15: #{tpu_custom_call.1} parent=1 // pred_check_branch
      %520 = sbr.rel (0) target = $region17
    $region16: #{tpu_custom_call.1} parent=1 // pred_region
      %521 = dma.done [#allocation3], 32
    $region17: #{tpu_custom_call.1} parent=1 // pred_fallthru
      _
    %522 = vsyncpa [#allocation3], 1

</llo_original>
